<compile_context>
chip_gen: v6e
topology: v6e:2x2x1
jax: 0.10.0
libtpu: 0.0.40
codegen_flags: <defaults>
</compile_context>

<pallas_src>
import jax
import jax.numpy as jnp
from jax.experimental import pallas as pl
from jax.experimental.pallas import tpu as pltpu


def _round_up(n, m):
    return ((n + m - 1) // m) * m


def _lstm_recurrence_kernel(xg_ref, wh_ref, ph_ref, pb_ref, out_ref, h_ref, c_ref):
    # xg_ref:  (1, bt, 4*Hp)  precomputed x_t @ Wx + b for this timestep / batch tile
    # wh_ref:  (Hp, 4*Hp)     recurrent weights (resident in VMEM)
    # ph_ref:  (Hp, Cp)       classifier weights (resident)
    # pb_ref:  (1, Cp)        classifier bias (resident)
    # out_ref: (bt, Cp)       written once, at the last timestep
    # h_ref, c_ref: (bt, Hp)  VMEM scratch persisting across the time grid axis
    t = pl.program_id(1)
    hp = h_ref.shape[1]

    @pl.when(t == 0)
    def _init():
        h_ref[...] = jnp.zeros_like(h_ref)
        c_ref[...] = jnp.zeros_like(c_ref)

    h = h_ref[...]
    c = c_ref[...]

    # Only the recurrent matmul remains on the serial critical path.
    gates = xg_ref[0] + jnp.dot(h, wh_ref[...], preferred_element_type=jnp.float32)

    # Gate order [g, i, f, o]; each slice is 128-lane aligned (hp % 128 == 0).
    g = jnp.tanh(gates[:, 0 * hp:1 * hp])
    i = jax.nn.sigmoid(gates[:, 1 * hp:2 * hp])
    f = jax.nn.sigmoid(gates[:, 2 * hp:3 * hp])
    o = jax.nn.sigmoid(gates[:, 3 * hp:4 * hp])

    c_new = g * i + c * f
    h_new = jnp.tanh(c_new) * o
    c_ref[...] = c_new
    h_ref[...] = h_new

    @pl.when(t == pl.num_programs(1) - 1)
    def _project():
        out_ref[...] = (jnp.dot(h_new, ph_ref[...], preferred_element_type=jnp.float32)
                        + pb_ref[...])


@jax.jit
def lstm_forward(x, params):
    """x: (B, T, D) float32. Returns (B, num_classes) float32."""
    b, t_len, _d = x.shape
    h_dim = params["gh"].shape[0]
    c_dim = params["ph"].shape[1]

    hp = _round_up(h_dim, 128)        # lane-align each gate block
    cp = _round_up(c_dim, 128)        # lane-dense output store
    bp = _round_up(b, 8)              # sublane quantum (fp32)
    bt = bp if bp <= 256 else 256     # batch tile (shardable across cores on v7x)
    bp = _round_up(bp, bt)
    nb = bp // bt

    def pad_cols(w, width):
        return jnp.pad(w, ((0, 0), (0, width - w.shape[1])))

    # Pack the 4 gates side by side in order [g, i, f, o], each padded to hp lanes.
    wx = jnp.concatenate([pad_cols(params[k + "x"], hp) for k in "gifo"], axis=1)    # (D, 4hp)
    wh = jnp.concatenate([pad_cols(params[k + "h"], hp) for k in "gifo"], axis=1)    # (H, 4hp)
    wh = jnp.pad(wh, ((0, hp - h_dim), (0, 0)))                                      # (hp, 4hp)
    bias = jnp.concatenate([pad_cols(params[k + "b"], hp) for k in "gifo"], axis=1)  # (1, 4hp)
    ph = jnp.pad(params["ph"], ((0, hp - h_dim), (0, cp - c_dim)))                   # (hp, cp)
    pb = pad_cols(params["pb"], cp)                                                  # (1, cp)

    # Hoisted input projection: one big matmul covering every timestep; bias folded in.
    x_pad = jnp.pad(x, ((0, bp - b), (0, 0), (0, 0)))                                # (bp, T, D)
    xg = jnp.einsum("btd,dh->tbh", x_pad, wx) + bias                                 # (T, bp, 4hp)

    itemsize = 4
    vmem_needed = itemsize * (hp * 4 * hp          # wh (resident)
                              + hp * cp + cp       # ph, pb
                              + 2 * bt * 4 * hp    # xg double buffer
                              + bt * cp            # output block
                              + 2 * bt * hp)       # h, c scratch
    vmem_limit = int(min(max(2 * vmem_needed, 16 << 20), 64 << 20))

    out = pl.pallas_call(
        _lstm_recurrence_kernel,
        out_shape=jax.ShapeDtypeStruct((bp, cp), jnp.float32),
        grid_spec=pltpu.PrefetchScalarGridSpec(
            num_scalar_prefetch=0,
            grid=(nb, t_len),
            in_specs=[
                pl.BlockSpec((1, bt, 4 * hp), lambda bi, ti: (ti, bi, 0)),  # xg (streamed over t)
                pl.BlockSpec((hp, 4 * hp), lambda bi, ti: (0, 0)),          # wh (resident)
                pl.BlockSpec((hp, cp), lambda bi, ti: (0, 0)),              # ph (resident)
                pl.BlockSpec((1, cp), lambda bi, ti: (0, 0)),               # pb (resident)
            ],
            out_specs=pl.BlockSpec((bt, cp), lambda bi, ti: (bi, 0)),
            scratch_shapes=[
                pltpu.VMEM((bt, hp), jnp.float32),   # h
                pltpu.VMEM((bt, hp), jnp.float32),   # c
            ],
        ),
        compiler_params=pltpu.CompilerParams(
            dimension_semantics=("parallel", "arbitrary"),
            vmem_limit_bytes=vmem_limit,
        ),
    )(xg, wh, ph, pb)

    return out[:b, :c_dim]


def init_params(key, input_dim, num_hidden, num_classes):
    """Deterministic xavier-normal weights, zero biases (forget bias = 1), like the module."""
    def xavier(k, shape):
        fan_in, fan_out = shape
        std = jnp.sqrt(2.0 / (fan_in + fan_out))
        return std * jax.random.normal(k, shape, jnp.float32)

    keys = jax.random.split(key, 9)
    p = {}
    for idx, gate in enumerate(["g", "i", "f", "o"]):
        p[gate + "x"] = xavier(keys[2 * idx], (input_dim, num_hidden))
        p[gate + "h"] = xavier(keys[2 * idx + 1], (num_hidden, num_hidden))
        if gate == "f":
            p[gate + "b"] = jnp.ones((1, num_hidden), jnp.float32)
        else:
            p[gate + "b"] = jnp.zeros((1, num_hidden), jnp.float32)
    p["ph"] = xavier(keys[8], (num_hidden, num_classes))
    p["pb"] = jnp.zeros((1, num_classes), jnp.float32)
    return p


def lstm_reference(x, params):
    """Pure-JAX reference mirroring the PyTorch forward, for correctness check."""
    H = params["gh"].shape[0]
    h = jnp.zeros((1, H), jnp.float32)
    c = jnp.zeros((1, H), jnp.float32)
    for t in range(x.shape[1]):
        xt = x[:, t]
        g = jnp.tanh(xt @ params["gx"] + h @ params["gh"] + params["gb"])
        i = jax.nn.sigmoid(xt @ params["ix"] + h @ params["ih"] + params["ib"])
        f = jax.nn.sigmoid(xt @ params["fx"] + h @ params["fh"] + params["fb"])
        o = jax.nn.sigmoid(xt @ params["ox"] + h @ params["oh"] + params["ob"])
        c = g * i + c * f
        h = jnp.tanh(c) * o
    return h @ params["ph"] + params["pb"]


if __name__ == "__main__":
    batch, seq_length, input_dim, num_hidden, num_classes = 2, 8, 4, 32, 10

    key = jax.random.PRNGKey(0)
    k_x, k_p = jax.random.split(key)
    x = jax.random.normal(k_x, (batch, seq_length, input_dim), jnp.float32)
    params = init_params(k_p, input_dim, num_hidden, num_classes)

    out = lstm_forward(x, params)
    out = jax.block_until_ready(out)

    ref = lstm_reference(x, params)
    assert out.shape == (batch, num_classes)
    assert jnp.allclose(out, ref, atol=1e-5, rtol=1e-5), "mismatch vs pure-JAX reference"

    print("KERNEL_OK")
</pallas_src>

<mosaic_0001>
module attributes {stable_mosaic.version = 11 : i64} {
  func.func @_lstm_recurrence_kernel(%arg0: i32, %arg1: i32, %arg2: memref<1x8x512xf32, #tpu.memory_space<vmem>>, %arg3: memref<128x512xf32, #tpu.memory_space<vmem>>, %arg4: memref<128x128xf32, #tpu.memory_space<vmem>>, %arg5: memref<1x128xf32, #tpu.memory_space<vmem>>, %arg6: memref<8x128xf32, #tpu.memory_space<vmem>>, %arg7: memref<8x128xf32, #tpu.memory_space<vmem>>, %arg8: memref<8x128xf32, #tpu.memory_space<vmem>>) attributes {dimension_semantics = [#tpu.dimension_semantics<parallel>, #tpu.dimension_semantics<arbitrary>], iteration_bounds = array<i64: 1, 8>, scalar_prefetch = 0 : i64, scratch_operands = 2 : i64, tpu.core_type = #tpu.core_type<tc>, window_params = [{transform_indices = @transform_0, window_bounds = array<i64: 1, 8, 512>}, {pipeline_mode = #tpu.pipeline_mode<synchronous>, transform_indices = @transform_1, window_bounds = array<i64: 128, 512>}, {pipeline_mode = #tpu.pipeline_mode<synchronous>, transform_indices = @transform_2, window_bounds = array<i64: 128, 128>}, {pipeline_mode = #tpu.pipeline_mode<synchronous>, transform_indices = @transform_3, window_bounds = array<i64: 1, 128>}, {transform_indices = @transform_4, window_bounds = array<i64: 8, 128>}]} {
    %c0_i32 = arith.constant 0 : i32
    %0 = arith.cmpi eq, %arg1, %c0_i32 : i32
    %1 = arith.extui %0 : i1 to i32
    %c0_i32_0 = arith.constant 0 : i32
    %2 = arith.cmpi ne, %1, %c0_i32_0 : i32
    scf.if %2 {
      %cst_17 = arith.constant 0.000000e+00 : f32
      %40 = vector.broadcast %cst_17 : f32 to vector<8x128xf32>
      %c0_18 = arith.constant 0 : index
      %c0_19 = arith.constant 0 : index
      %41 = vector.load %arg7[%c0_18, %c0_19] : memref<8x128xf32, #tpu.memory_space<vmem>>, vector<8x128xf32>
      tpu.vector_store %arg7[%c0_18, %c0_19], %40 {strides = array<i32>} : memref<8x128xf32, #tpu.memory_space<vmem>>, vector<8x128xf32>,
      %cst_20 = arith.constant 0.000000e+00 : f32
      %42 = vector.broadcast %cst_20 : f32 to vector<8x128xf32>
      %c0_21 = arith.constant 0 : index
      %c0_22 = arith.constant 0 : index
      %43 = vector.load %arg8[%c0_21, %c0_22] : memref<8x128xf32, #tpu.memory_space<vmem>>, vector<8x128xf32>
      tpu.vector_store %arg8[%c0_21, %c0_22], %42 {strides = array<i32>} : memref<8x128xf32, #tpu.memory_space<vmem>>, vector<8x128xf32>,
    } else {
    }
    %c0 = arith.constant 0 : index
    %c0_1 = arith.constant 0 : index
    %3 = vector.load %arg7[%c0, %c0_1] : memref<8x128xf32, #tpu.memory_space<vmem>>, vector<8x128xf32>
    %c0_2 = arith.constant 0 : index
    %c0_3 = arith.constant 0 : index
    %4 = vector.load %arg8[%c0_2, %c0_3] : memref<8x128xf32, #tpu.memory_space<vmem>>, vector<8x128xf32>
    %c0_4 = arith.constant 0 : index
    %c0_5 = arith.constant 0 : index
    %c0_6 = arith.constant 0 : index
    %5 = vector.load %arg2[%c0_4, %c0_5, %c0_6] : memref<1x8x512xf32, #tpu.memory_space<vmem>>, vector<1x8x512xf32>
    %6 = vector.shape_cast %5 : vector<1x8x512xf32> to vector<8x512xf32>
    %c0_7 = arith.constant 0 : index
    %c0_8 = arith.constant 0 : index
    %7 = vector.load %arg3[%c0_7, %c0_8] : memref<128x512xf32, #tpu.memory_space<vmem>>, vector<128x512xf32>
    %cst = arith.constant dense<0.000000e+00> : vector<8x512xf32>
    %8 = tpu.matmul %3, %7, %cst {dimension_numbers = #tpu.dot_dimension_numbers<[1], [0], [0], [1], [0, 0, 1, 1], [], []>} : vector<8x128xf32>, vector<128x512xf32>, vector<8x512xf32> -> vector<8x512xf32>
    %9 = arith.addf %6, %8 : vector<8x512xf32>
    %10 = vector.extract_strided_slice %9 {offsets = [0, 0], sizes = [8, 128], strides = [1, 1]} : vector<8x512xf32> to vector<8x128xf32>
    %11 = math.tanh %10 : vector<8x128xf32>
    %12 = vector.extract_strided_slice %9 {offsets = [0, 128], sizes = [8, 128], strides = [1, 1]} : vector<8x512xf32> to vector<8x128xf32>
    %13 = arith.negf %12 : vector<8x128xf32>
    %14 = math.exp %13 : vector<8x128xf32>
    %cst_9 = arith.constant 1.000000e+00 : f32
    %15 = vector.broadcast %cst_9 : f32 to vector<8x128xf32>
    %16 = arith.addf %15, %14 : vector<8x128xf32>
    %17 = arith.divf %15, %16 : vector<8x128xf32>
    %18 = vector.extract_strided_slice %9 {offsets = [0, 256], sizes = [8, 128], strides = [1, 1]} : vector<8x512xf32> to vector<8x128xf32>
    %19 = arith.negf %18 : vector<8x128xf32>
    %20 = math.exp %19 : vector<8x128xf32>
    %cst_10 = arith.constant 1.000000e+00 : f32
    %21 = vector.broadcast %cst_10 : f32 to vector<8x128xf32>
    %22 = arith.addf %21, %20 : vector<8x128xf32>
    %23 = arith.divf %21, %22 : vector<8x128xf32>
    %24 = vector.extract_strided_slice %9 {offsets = [0, 384], sizes = [8, 128], strides = [1, 1]} : vector<8x512xf32> to vector<8x128xf32>
    %25 = arith.negf %24 : vector<8x128xf32>
    %26 = math.exp %25 : vector<8x128xf32>
    %cst_11 = arith.constant 1.000000e+00 : f32
    %27 = vector.broadcast %cst_11 : f32 to vector<8x128xf32>
    %28 = arith.addf %27, %26 : vector<8x128xf32>
    %29 = arith.divf %27, %28 : vector<8x128xf32>
    %30 = arith.mulf %11, %17 : vector<8x128xf32>
    %31 = arith.mulf %4, %23 : vector<8x128xf32>
    %32 = arith.addf %30, %31 : vector<8x128xf32>
    %33 = math.tanh %32 : vector<8x128xf32>
    %34 = arith.mulf %33, %29 : vector<8x128xf32>
    %c0_12 = arith.constant 0 : index
    %c0_13 = arith.constant 0 : index
    %35 = vector.load %arg8[%c0_12, %c0_13] : memref<8x128xf32, #tpu.memory_space<vmem>>, vector<8x128xf32>
    tpu.vector_store %arg8[%c0_12, %c0_13], %32 {strides = array<i32>} : memref<8x128xf32, #tpu.memory_space<vmem>>, vector<8x128xf32>,
    %c0_14 = arith.constant 0 : index
    %c0_15 = arith.constant 0 : index
    %36 = vector.load %arg7[%c0_14, %c0_15] : memref<8x128xf32, #tpu.memory_space<vmem>>, vector<8x128xf32>
    tpu.vector_store %arg7[%c0_14, %c0_15], %34 {strides = array<i32>} : memref<8x128xf32, #tpu.memory_space<vmem>>, vector<8x128xf32>,
    %c7_i32 = arith.constant 7 : i32
    %37 = arith.cmpi eq, %arg1, %c7_i32 : i32
    %38 = arith.extui %37 : i1 to i32
    %c0_i32_16 = arith.constant 0 : i32
    %39 = arith.cmpi ne, %38, %c0_i32_16 : i32
    scf.if %39 {
      %c0_17 = arith.constant 0 : index
      %c0_18 = arith.constant 0 : index
      %40 = vector.load %arg4[%c0_17, %c0_18] : memref<128x128xf32, #tpu.memory_space<vmem>>, vector<128x128xf32>
      %cst_19 = arith.constant dense<0.000000e+00> : vector<8x128xf32>
      %41 = tpu.matmul %34, %40, %cst_19 {dimension_numbers = #tpu.dot_dimension_numbers<[1], [0], [0], [1], [0, 0, 1, 1], [], []>} : vector<8x128xf32>, vector<128x128xf32>, vector<8x128xf32> -> vector<8x128xf32>
      %c0_20 = arith.constant 0 : index
      %c0_21 = arith.constant 0 : index
      %42 = vector.load %arg5[%c0_20, %c0_21] : memref<1x128xf32, #tpu.memory_space<vmem>>, vector<1x128xf32>
      %43 = vector.broadcast %42 : vector<1x128xf32> to vector<8x128xf32>
      %44 = arith.addf %41, %43 : vector<8x128xf32>
      %c0_22 = arith.constant 0 : index
      %c0_23 = arith.constant 0 : index
      %45 = vector.load %arg6[%c0_22, %c0_23] : memref<8x128xf32, #tpu.memory_space<vmem>>, vector<8x128xf32>
      tpu.vector_store %arg6[%c0_22, %c0_23], %44 {strides = array<i32>} : memref<8x128xf32, #tpu.memory_space<vmem>>, vector<8x128xf32>,
    } else {
    }
    return
  }
  func.func @transform_0(%arg0: i32, %arg1: i32) -> (i32, i32, i32) {
    %c0_i32 = arith.constant 0 : i32
    %c0_i32_0 = arith.constant 0 : i32
    return %arg1, %arg0, %c0_i32 : i32, i32, i32
  }
  func.func @transform_1(%arg0: i32, %arg1: i32) -> (i32, i32) {
    %c0_i32 = arith.constant 0 : i32
    %c0_i32_0 = arith.constant 0 : i32
    %c0_i32_1 = arith.constant 0 : i32
    return %c0_i32, %c0_i32_0 : i32, i32
  }
  func.func @transform_2(%arg0: i32, %arg1: i32) -> (i32, i32) {
    %c0_i32 = arith.constant 0 : i32
    %c0_i32_0 = arith.constant 0 : i32
    %c0_i32_1 = arith.constant 0 : i32
    return %c0_i32, %c0_i32_0 : i32, i32
  }
  func.func @transform_3(%arg0: i32, %arg1: i32) -> (i32, i32) {
    %c0_i32 = arith.constant 0 : i32
    %c0_i32_0 = arith.constant 0 : i32
    %c0_i32_1 = arith.constant 0 : i32
    return %c0_i32, %c0_i32_0 : i32, i32
  }
  func.func @transform_4(%arg0: i32, %arg1: i32) -> (i32, i32) {
    %c0_i32 = arith.constant 0 : i32
    %c0_i32_0 = arith.constant 0 : i32
    return %arg0, %c0_i32 : i32, i32
  }
}

</mosaic_0001>

<llo_original>
// kernel: lstm_forward.1
$region0: #{lstm_forward.1}
  #allocation0 [shape = 'u32[]', space=smem, size = 0x4, offset = 0x4, fixed_abs, tag = 'smem constant byte address 0x4 - core index']
  #allocation1 [shape = 'u32[144,128]{1,0:T(1,128)}', space=vmem, size = 0x12000, scoped, tag = 'internal scratch']
  #allocation2 [shape = 'f32[8,128]{1,0:T(8,128)}', space=vmem, size = 0x1000, scoped, tag = 'scratch operand']
  #allocation3 [shape = 'f32[8,128]{1,0:T(8,128)}', space=vmem, size = 0x1000, scoped, tag = 'scratch operand']
  %s0 = inlined_call_operand.vmem [shape: f32[8,8,512], index: 0, kind: input, shape index: {}]
  %s1 = inlined_call_operand.vmem [shape: f32[128,512], index: 1, kind: input, shape index: {}]
  %s2 = inlined_call_operand.vmem [shape: f32[128,128], index: 2, kind: input, shape index: {}]
  %s3 = inlined_call_operand.vmem [shape: f32[1,128], index: 3, kind: input, shape index: {}]
  %s4 = inlined_call_operand.vmem [shape: f32[8,128], index: 4, kind: output, shape index: {}]
  %s5 = sld [smem:[#allocation0]]
  $region57: #{lstm_forward.1} parent=0
    _
  %s7 = ssub.s32 1, %s5
  %s8 = scalar_select 0, %s7, %s5
  loop: start=0, step=1, limit=10
  $region2: #{lstm_forward.1} parent=0 // loop_pre_header
    _
  $region3: #{lstm_forward.1} parent=0 // loop_header
    %s10 = sphi 0, %s14
    %p11 = scmp.ge.s32.totalorder %s10, 10
    %s17 = sphi 0, %s29
    %s18 = sphi 0, %s25
    %s19 = sphi 0, %s17
    %s20 = sphi 0, %s18
    %s21 = sphi 0, %s19
    %s22 = sphi 0, %s20
    %s34 = sphi 0, %s36
    %s37 = sphi 0, %s34
    %s38 = sphi 0, %s37
    %s54 = sphi 0, %s38
    %s58 = sphi 0, %s58
    %s60 = sphi 0, %s58
    %s61 = sphi 0, %s60
    %s75 = sphi 0, %s61
    %s79 = sphi 0, %s79
    %s81 = sphi 0, %s79
    %s82 = sphi 0, %s81
    %s96 = sphi 0, %s82
    %s100 = sphi 0, %s100
    %s102 = sphi 0, %s100
    %s103 = sphi 0, %s102
    %s117 = sphi 0, %s103
    %s123 = sphi 0, %s125
    %s126 = sphi 0, %s123
    %s127 = sphi 0, %s126
    %s143 = sphi 0, %s127
  $region4: #{lstm_forward.1} parent=0 // loop_header_branch
    %13 = sbr.rel (%p11) target = $region8
  $region5: #{lstm_forward.1} parent=0 // loop_body
    %s15 = ssub.s32 %s10, 1
    %s16 = ssub.s32 %s10, 2
    %s23 = sadd.s32 1, %s18
    %p24 = scmp.ge.s32.totalorder %s23, 8
    %s25 = scalar_select %p24, 0, %s23
    %s26 = sadd.s32 1, %s17
    %s27 = scalar_select %p24, %s26, %s17
    %p28 = scmp.ge.s32.totalorder %s27, 1
    %s29 = scalar_select %p28, 0, %s27
    %s30 = ssub.s32 %s18, %s25
    %s31 = ssub.s32 %s17, %s29
    %s32 = sor.u32 %s30, %s31
    %p33 = scmp.eq.s32.totalorder %s32, 0
    %s35 = sadd.s32 %s34, 1
    %s36 = scalar_select %p33, %s34, %s35
    %p39 = pneg %p33
    %p40 = scmp.eq.s32.totalorder %s10, 7
    %p41 = por %p39, %p40
    %p42 = scmp.ne.s32.totalorder %s34, %s37
    %p43 = scmp.eq.s32.totalorder %s10, 0
    %p44 = por %p42, %p43
    %p45 = scmp.ne.s32.totalorder %s34, %s37
    %p46 = scmp.eq.s32.totalorder %s15, 7
    %p47 = por %p45, %p46
    %p48 = scmp.ne.s32.totalorder %s37, %s38
    %p49 = scmp.eq.s32.totalorder %s15, 0
    %p50 = por %p48, %p49
    %p51 = scmp.ne.s32.totalorder %s37, %s38
    %p52 = scmp.eq.s32.totalorder %s16, 7
    %p53 = por %p51, %p52
    %p55 = scmp.ne.s32.totalorder %s38, %s54
    %p56 = scmp.eq.s32.totalorder %s16, 0
    %p57 = por %p55, %p56
    %s59 = sadd.s32 %s58, 1
    %p62 = scmp.eq.s32.totalorder %s10, 7
    %p63 = scmp.ne.s32.totalorder %s58, %s60
    %p64 = scmp.eq.s32.totalorder %s10, 0
    %p65 = por %p63, %p64
    %p66 = scmp.ne.s32.totalorder %s58, %s60
    %p67 = scmp.eq.s32.totalorder %s15, 7
    %p68 = por %p66, %p67
    %p69 = scmp.ne.s32.totalorder %s60, %s61
    %p70 = scmp.eq.s32.totalorder %s15, 0
    %p71 = por %p69, %p70
    %p72 = scmp.ne.s32.totalorder %s60, %s61
    %p73 = scmp.eq.s32.totalorder %s16, 7
    %p74 = por %p72, %p73
    %p76 = scmp.ne.s32.totalorder %s61, %s75
    %p77 = scmp.eq.s32.totalorder %s16, 0
    %p78 = por %p76, %p77
    %s80 = sadd.s32 %s79, 1
    %p83 = scmp.eq.s32.totalorder %s10, 7
    %p84 = scmp.ne.s32.totalorder %s79, %s81
    %p85 = scmp.eq.s32.totalorder %s10, 0
    %p86 = por %p84, %p85
    %p87 = scmp.ne.s32.totalorder %s79, %s81
    %p88 = scmp.eq.s32.totalorder %s15, 7
    %p89 = por %p87, %p88
    %p90 = scmp.ne.s32.totalorder %s81, %s82
    %p91 = scmp.eq.s32.totalorder %s15, 0
    %p92 = por %p90, %p91
    %p93 = scmp.ne.s32.totalorder %s81, %s82
    %p94 = scmp.eq.s32.totalorder %s16, 7
    %p95 = por %p93, %p94
    %p97 = scmp.ne.s32.totalorder %s82, %s96
    %p98 = scmp.eq.s32.totalorder %s16, 0
    %p99 = por %p97, %p98
    %s101 = sadd.s32 %s100, 1
    %p104 = scmp.eq.s32.totalorder %s10, 7
    %p105 = scmp.ne.s32.totalorder %s100, %s102
    %p106 = scmp.eq.s32.totalorder %s10, 0
    %p107 = por %p105, %p106
    %p108 = scmp.ne.s32.totalorder %s100, %s102
    %p109 = scmp.eq.s32.totalorder %s15, 7
    %p110 = por %p108, %p109
    %p111 = scmp.ne.s32.totalorder %s102, %s103
    %p112 = scmp.eq.s32.totalorder %s15, 0
    %p113 = por %p111, %p112
    %p114 = scmp.ne.s32.totalorder %s102, %s103
    %p115 = scmp.eq.s32.totalorder %s16, 7
    %p116 = por %p114, %p115
    %p118 = scmp.ne.s32.totalorder %s103, %s117
    %p119 = scmp.eq.s32.totalorder %s16, 0
    %p120 = por %p118, %p119
    %s121 = ssub.s32 %s17, %s29
    %p122 = scmp.eq.s32.totalorder %s121, 0
    %s124 = sadd.s32 %s123, 1
    %s125 = scalar_select %p122, %s123, %s124
    %p128 = pneg %p122
    %p129 = scmp.eq.s32.totalorder %s10, 7
    %p130 = por %p128, %p129
    %p131 = scmp.ne.s32.totalorder %s123, %s126
    %p132 = scmp.eq.s32.totalorder %s10, 0
    %p133 = por %p131, %p132
    %p134 = scmp.ne.s32.totalorder %s123, %s126
    %p135 = scmp.eq.s32.totalorder %s15, 7
    %p136 = por %p134, %p135
    %p137 = scmp.ne.s32.totalorder %s126, %s127
    %p138 = scmp.eq.s32.totalorder %s15, 0
    %p139 = por %p137, %p138
    %p140 = scmp.ne.s32.totalorder %s126, %s127
    %p141 = scmp.eq.s32.totalorder %s16, 7
    %p142 = por %p140, %p141
    %p144 = scmp.ne.s32.totalorder %s127, %s143
    %p145 = scmp.eq.s32.totalorder %s16, 0
    %p146 = por %p144, %p145
    %p147 = scmp.le.s32.totalorder 1, %s10
    %p148 = scmp.lt.s32.totalorder %s10, 9
    %p149 = pnand %p147, %p148
    %p150 = pneg %p149
    // Predicated region
    $region9: #{lstm_forward.1} parent=5 // pred_check
      _
    $region10: #{lstm_forward.1} parent=5 // pred_check_branch
      %152 = sbr.rel (%p149) target = $region12
    $region11: #{lstm_forward.1} parent=5 // pred_region
      %s153 = ssub.s32 %s10, 1
      // Predicated region
      $region13: #{lstm_forward.1} parent=11 // pred_check
        %p154 = pneg %p71
      $region14: #{lstm_forward.1} parent=11 // pred_check_branch
        %156 = sbr.rel (%p154) target = $region16
      $region15: #{lstm_forward.1} parent=11 // pred_region
        _
      $region16: #{lstm_forward.1} parent=11 // pred_fallthru
        _
      // Predicated region
      $region17: #{lstm_forward.1} parent=11 // pred_check
        %p157 = pneg %p92
      $region18: #{lstm_forward.1} parent=11 // pred_check_branch
        %159 = sbr.rel (%p157) target = $region20
      $region19: #{lstm_forward.1} parent=11 // pred_region
        _
      $region20: #{lstm_forward.1} parent=11 // pred_fallthru
        _
      // Predicated region
      $region21: #{lstm_forward.1} parent=11 // pred_check
        %p160 = pneg %p113
      $region22: #{lstm_forward.1} parent=11 // pred_check_branch
        %162 = sbr.rel (%p160) target = $region24
      $region23: #{lstm_forward.1} parent=11 // pred_region
        _
      $region24: #{lstm_forward.1} parent=11 // pred_fallthru
        _
    $region12: #{lstm_forward.1} parent=5 // pred_fallthru
      _
    %p163 = scmp.lt.s32.totalorder %s10, 8
    // Predicated region
    $region25: #{lstm_forward.1} parent=5 // pred_check
      %p164 = pneg %p163
    $region26: #{lstm_forward.1} parent=5 // pred_check_branch
      %166 = sbr.rel (%p164) target = $region28
    $region27: #{lstm_forward.1} parent=5 // pred_region
      // Predicated region
      $region29: #{lstm_forward.1} parent=27 // pred_check
        %p167 = pneg %p44
      $region30: #{lstm_forward.1} parent=27 // pred_check_branch
        %169 = sbr.rel (%p167) target = $region32
      $region31: #{lstm_forward.1} parent=27 // pred_region
        %p170 = scmp.lt.s32.totalorder %s18, 7
        %s171 = scalar_select %p170, %s18, 7
        %p172 = scmp.lt.s32.totalorder %s17, 0
        %s173 = scalar_select %p172, %s17, 0
        %s174 = smul.addr %s173, 4
        %s175 = smul.addr %s171, 4
        %s176 = sadd.s32 %s174, %s175
        %s177 = smul.addr %s176, 8
        %s178 = scalar_lea.vmem %s0, %s177
      $region32: #{lstm_forward.1} parent=27 // pred_fallthru
        _
    $region28: #{lstm_forward.1} parent=5 // pred_fallthru
      _
    %p179 = scmp.le.s32.totalorder 1, %s10
    %p180 = scmp.lt.s32.totalorder %s10, 9
    %p181 = pnand %p179, %p180
    %p182 = pneg %p181
    // Predicated region
    $region33: #{lstm_forward.1} parent=5 // pred_check
      _
    $region34: #{lstm_forward.1} parent=5 // pred_check_branch
      %184 = sbr.rel (%p181) target = $region36
    $region35: #{lstm_forward.1} parent=5 // pred_region
      %s185 = ssub.s32 %s10, 1
      %p186 = scmp.lt.s32.totalorder %s20, 7
      %s187 = scalar_select %p186, %s20, 7
      %p188 = scmp.lt.s32.totalorder %s19, 0
      %s189 = scalar_select %p188, %s19, 0
      %s190 = smul.addr %s189, 4
      %s191 = smul.addr %s187, 4
      %s192 = sadd.s32 %s190, %s191
      %s193 = smul.addr %s192, 8
      %s194 = scalar_lea.vmem %s0, %s193
      %p195 = pneg %p50
      %p196 = pneg %p47
      %p197 = pneg %p71
      %p198 = pneg %p68
      %p199 = pneg %p92
      %p200 = pneg %p89
      %p201 = pneg %p113
      %p202 = pneg %p110
      %p203 = pneg %p139
      %p204 = pneg %p136
      %p205 = scmp.lt.s32.totalorder %s19, 0
      %s206 = scalar_select %p205, %s19, 0
      %s207 = smul.addr %s206, 8
      %s208 = scalar_lea.vmem %s4, %s207
      %p209 = scmp.lt.s32.totalorder %s20, 7
      %s210 = scalar_select %p209, %s20, 7
      %p211 = scmp.lt.s32.totalorder %s19, 0
      %s212 = scalar_select %p211, %s19, 0
      %s213 = smul.addr %s212, 4
      %s214 = smul.addr %s210, 4
      %s215 = sadd.s32 %s213, %s214
      %s216 = smul.addr %s215, 8
      %s217 = scalar_lea.vmem %s0, %s216
      %p218 = scmp.lt.s32.totalorder %s19, 0
      %s219 = scalar_select %p218, %s19, 0
      %s220 = smul.addr %s219, 8
      %s221 = scalar_lea.vmem %s4, %s220
      %p222 = scmp.eq.s32.totalorder %s20, 0
      // Predicated region
      $region37: #{lstm_forward.1} parent=35 // pred_check
        %p223 = pneg %p222
      $region38: #{lstm_forward.1} parent=35 // pred_check_branch
        %225 = sbr.rel (%p223) target = $region40
      $region39: #{lstm_forward.1} parent=35 // pred_region
        %226 = vst [vmem:[#allocation2] sm:$0xff] 0.0
        %227 = vst [vmem:[#allocation3] sm:$0xff] 0.0
      $region40: #{lstm_forward.1} parent=35 // pred_fallthru
        _
      %v228 = vld [vmem:[#allocation2] sm:$0xff]
      %v229 = vld [vmem:[#allocation3] sm:$0xff]
      %v230 = vld [vmem:[%s217] sm:$0xff]
      %v231 = vld [vmem:[%s217 + $0x8] sm:$0xff]
      %v232 = vld [vmem:[%s217 + $0x10] sm:$0xff]
      %v233 = vld [vmem:[%s217 + $0x18] sm:$0xff]
      %v234 = vld [vmem:[%s1] sm:$0xff]
      %v235 = vld [vmem:[%s1 + $0x8] sm:$0xff]
      %v236 = vld [vmem:[%s1 + $0x10] sm:$0xff]
      %v237 = vld [vmem:[%s1 + $0x18] sm:$0xff]
      %v238 = vld [vmem:[%s1 + $0x20] sm:$0xff]
      %v239 = vld [vmem:[%s1 + $0x28] sm:$0xff]
      %v240 = vld [vmem:[%s1 + $0x30] sm:$0xff]
      %v241 = vld [vmem:[%s1 + $0x38] sm:$0xff]
      %v242 = vld [vmem:[%s1 + $0x40] sm:$0xff]
      %v243 = vld [vmem:[%s1 + $0x48] sm:$0xff]
      %v244 = vld [vmem:[%s1 + $0x50] sm:$0xff]
      %v245 = vld [vmem:[%s1 + $0x58] sm:$0xff]
      %v246 = vld [vmem:[%s1 + $0x60] sm:$0xff]
      %v247 = vld [vmem:[%s1 + $0x68] sm:$0xff]
      %v248 = vld [vmem:[%s1 + $0x70] sm:$0xff]
      %v249 = vld [vmem:[%s1 + $0x78] sm:$0xff]
      %v250 = vld [vmem:[%s1 + $0x80] sm:$0xff]
      %v251 = vld [vmem:[%s1 + $0x88] sm:$0xff]
      %v252 = vld [vmem:[%s1 + $0x90] sm:$0xff]
      %v253 = vld [vmem:[%s1 + $0x98] sm:$0xff]
      %v254 = vld [vmem:[%s1 + $0xa0] sm:$0xff]
      %v255 = vld [vmem:[%s1 + $0xa8] sm:$0xff]
      %v256 = vld [vmem:[%s1 + $0xb0] sm:$0xff]
      %v257 = vld [vmem:[%s1 + $0xb8] sm:$0xff]
      %v258 = vld [vmem:[%s1 + $0xc0] sm:$0xff]
      %v259 = vld [vmem:[%s1 + $0xc8] sm:$0xff]
      %v260 = vld [vmem:[%s1 + $0xd0] sm:$0xff]
      %v261 = vld [vmem:[%s1 + $0xd8] sm:$0xff]
      %v262 = vld [vmem:[%s1 + $0xe0] sm:$0xff]
      %v263 = vld [vmem:[%s1 + $0xe8] sm:$0xff]
      %v264 = vld [vmem:[%s1 + $0xf0] sm:$0xff]
      %v265 = vld [vmem:[%s1 + $0xf8] sm:$0xff]
      %v266 = vld [vmem:[%s1 + $0x100] sm:$0xff]
      %v267 = vld [vmem:[%s1 + $0x108] sm:$0xff]
      %v268 = vld [vmem:[%s1 + $0x110] sm:$0xff]
      %v269 = vld [vmem:[%s1 + $0x118] sm:$0xff]
      %v270 = vld [vmem:[%s1 + $0x120] sm:$0xff]
      %v271 = vld [vmem:[%s1 + $0x128] sm:$0xff]
      %v272 = vld [vmem:[%s1 + $0x130] sm:$0xff]
      %v273 = vld [vmem:[%s1 + $0x138] sm:$0xff]
      %v274 = vld [vmem:[%s1 + $0x140] sm:$0xff]
      %v275 = vld [vmem:[%s1 + $0x148] sm:$0xff]
      %v276 = vld [vmem:[%s1 + $0x150] sm:$0xff]
      %v277 = vld [vmem:[%s1 + $0x158] sm:$0xff]
      %v278 = vld [vmem:[%s1 + $0x160] sm:$0xff]
      %v279 = vld [vmem:[%s1 + $0x168] sm:$0xff]
      %v280 = vld [vmem:[%s1 + $0x170] sm:$0xff]
      %v281 = vld [vmem:[%s1 + $0x178] sm:$0xff]
      %v282 = vld [vmem:[%s1 + $0x180] sm:$0xff]
      %v283 = vld [vmem:[%s1 + $0x188] sm:$0xff]
      %v284 = vld [vmem:[%s1 + $0x190] sm:$0xff]
      %v285 = vld [vmem:[%s1 + $0x198] sm:$0xff]
      %v286 = vld [vmem:[%s1 + $0x1a0] sm:$0xff]
      %v287 = vld [vmem:[%s1 + $0x1a8] sm:$0xff]
      %v288 = vld [vmem:[%s1 + $0x1b0] sm:$0xff]
      %v289 = vld [vmem:[%s1 + $0x1b8] sm:$0xff]
      %v290 = vld [vmem:[%s1 + $0x1c0] sm:$0xff]
      %v291 = vld [vmem:[%s1 + $0x1c8] sm:$0xff]
      %v292 = vld [vmem:[%s1 + $0x1d0] sm:$0xff]
      %v293 = vld [vmem:[%s1 + $0x1d8] sm:$0xff]
      %v294 = vld [vmem:[%s1 + $0x1e0] sm:$0xff]
      %v295 = vld [vmem:[%s1 + $0x1e8] sm:$0xff]
      %v296 = vld [vmem:[%s1 + $0x1f0] sm:$0xff]
      %v297 = vld [vmem:[%s1 + $0x1f8] sm:$0xff]
      %298 = vmatprep.subr.mxu0 %v295
      %299 = vmatpush1.msra.mxu0 %v294
      %300 = vmatprep.subr.mxu0 %v291
      %301 = vmatpush1.msra.mxu0 %v290
      %302 = vmatprep.subr.mxu0 %v287
      %303 = vmatpush1.msra.mxu0 %v286
      %304 = vmatprep.subr.mxu0 %v283
      %305 = vmatpush1.msra.mxu0 %v282
      %306 = vmatprep.subr.mxu0 %v279
      %307 = vmatpush1.msra.mxu0 %v278
      %308 = vmatprep.subr.mxu0 %v275
      %309 = vmatpush1.msra.mxu0 %v274
      %310 = vmatprep.subr.mxu0 %v271
      %311 = vmatpush1.msra.mxu0 %v270
      %312 = vmatprep.subr.mxu0 %v267
      %313 = vmatpush1.msra.mxu0 %v266
      %314 = vmatprep.subr.mxu0 %v263
      %315 = vmatpush1.msra.mxu0 %v262
      %316 = vmatprep.subr.mxu0 %v259
      %317 = vmatpush1.msra.mxu0 %v258
      %318 = vmatprep.subr.mxu0 %v255
      %319 = vmatpush1.msra.mxu0 %v254
      %320 = vmatprep.subr.mxu0 %v251
      %321 = vmatpush1.msra.mxu0 %v250
      %322 = vmatprep.subr.mxu0 %v247
      %323 = vmatpush1.msra.mxu0 %v246
      %324 = vmatprep.subr.mxu0 %v243
      %325 = vmatpush1.msra.mxu0 %v242
      %326 = vmatprep.subr.mxu0 %v239
      %327 = vmatpush1.msra.mxu0 %v238
      %328 = vmatprep.subr.mxu0 %v235
      %329 = vmatpush1.msra.mxu0 %v234
      %330 = vmatprep.subr.mxu0 0.0
      %331 = vmatpush2.msra.mxu0 0.0
      %332 = vmatprep.subr.mxu0 0.0
      %333 = vmatpush2.msra.mxu0 0.0
      %334 = vmatprep.subr.mxu0 0.0
      %335 = vmatpush2.msra.mxu0 0.0
      %336 = vmatprep.subr.mxu0 0.0
      %337 = vmatpush2.msra.mxu0 0.0
      %338 = vmatprep.subr.mxu0 0.0
      %339 = vmatpush2.msra.mxu0 0.0
      %340 = vmatprep.subr.mxu0 0.0
      %341 = vmatpush2.msra.mxu0 0.0
      %342 = vmatprep.subr.mxu0 0.0
      %343 = vmatpush2.msra.mxu0 0.0
      %344 = vmatprep.subr.mxu0 0.0
      %345 = vmatpush2.msra.mxu0 0.0
      %346 = vmatprep.subr.mxu0 0.0
      %347 = vmatpush2.msra.mxu0 0.0
      %348 = vmatprep.subr.mxu0 0.0
      %349 = vmatpush2.msra.mxu0 0.0
      %350 = vmatprep.subr.mxu0 0.0
      %351 = vmatpush2.msra.mxu0 0.0
      %352 = vmatprep.subr.mxu0 0.0
      %353 = vmatpush2.msra.mxu0 0.0
      %354 = vmatprep.subr.mxu0 0.0
      %355 = vmatpush2.msra.mxu0 0.0
      %356 = vmatprep.subr.mxu0 0.0
      %357 = vmatpush2.msra.mxu0 0.0
      %358 = vmatprep.subr.mxu0 0.0
      %359 = vmatpush2.msra.mxu0 0.0
      %360 = vmatprep.subr.mxu0 0.0
      %361 = vmatpush2.msra.mxu0 0.0
      %362 = vmatprep.mubr.f32.mxu0 0.0
      %363 = vmatmul.mubr.f32.gmra.mxu0 %v228
      %v364 = vpop.f32.mrf.mxu0
      %v365 = vadd.f32 0.0, %v364
      %v366 = vpop.f32.mrf.mxu0
      %v367 = vadd.f32 0.0, %v366
      %368 = vdwg.mxu0
      %369 = vmatprep.subr.mxu0 %v297
      %370 = vmatpush1.msra.mxu0 %v296
      %371 = vmatprep.subr.mxu0 %v293
      %372 = vmatpush1.msra.mxu0 %v292
      %373 = vmatprep.subr.mxu0 %v289
      %374 = vmatpush1.msra.mxu0 %v288
      %375 = vmatprep.subr.mxu0 %v285
      %376 = vmatpush1.msra.mxu0 %v284
      %377 = vmatprep.subr.mxu0 %v281
      %378 = vmatpush1.msra.mxu0 %v280
      %379 = vmatprep.subr.mxu0 %v277
      %380 = vmatpush1.msra.mxu0 %v276
      %381 = vmatprep.subr.mxu0 %v273
      %382 = vmatpush1.msra.mxu0 %v272
      %383 = vmatprep.subr.mxu0 %v269
      %384 = vmatpush1.msra.mxu0 %v268
      %385 = vmatprep.subr.mxu0 %v265
      %386 = vmatpush1.msra.mxu0 %v264
      %387 = vmatprep.subr.mxu0 %v261
      %388 = vmatpush1.msra.mxu0 %v260
      %389 = vmatprep.subr.mxu0 %v257
      %390 = vmatpush1.msra.mxu0 %v256
      %391 = vmatprep.subr.mxu0 %v253
      %392 = vmatpush1.msra.mxu0 %v252
      %393 = vmatprep.subr.mxu0 %v249
      %394 = vmatpush1.msra.mxu0 %v248
      %395 = vmatprep.subr.mxu0 %v245
      %396 = vmatpush1.msra.mxu0 %v244
      %397 = vmatprep.subr.mxu0 %v241
      %398 = vmatpush1.msra.mxu0 %v240
      %399 = vmatprep.subr.mxu0 %v237
      %400 = vmatpush1.msra.mxu0 %v236
      %401 = vmatprep.subr.mxu0 0.0
      %402 = vmatpush2.msra.mxu0 0.0
      %403 = vmatprep.subr.mxu0 0.0
      %404 = vmatpush2.msra.mxu0 0.0
      %405 = vmatprep.subr.mxu0 0.0
      %406 = vmatpush2.msra.mxu0 0.0
      %407 = vmatprep.subr.mxu0 0.0
      %408 = vmatpush2.msra.mxu0 0.0
      %409 = vmatprep.subr.mxu0 0.0
      %410 = vmatpush2.msra.mxu0 0.0
      %411 = vmatprep.subr.mxu0 0.0
      %412 = vmatpush2.msra.mxu0 0.0
      %413 = vmatprep.subr.mxu0 0.0
      %414 = vmatpush2.msra.mxu0 0.0
      %415 = vmatprep.subr.mxu0 0.0
      %416 = vmatpush2.msra.mxu0 0.0
      %417 = vmatprep.subr.mxu0 0.0
      %418 = vmatpush2.msra.mxu0 0.0
      %419 = vmatprep.subr.mxu0 0.0
      %420 = vmatpush2.msra.mxu0 0.0
      %421 = vmatprep.subr.mxu0 0.0
      %422 = vmatpush2.msra.mxu0 0.0
      %423 = vmatprep.subr.mxu0 0.0
      %424 = vmatpush2.msra.mxu0 0.0
      %425 = vmatprep.subr.mxu0 0.0
      %426 = vmatpush2.msra.mxu0 0.0
      %427 = vmatprep.subr.mxu0 0.0
      %428 = vmatpush2.msra.mxu0 0.0
      %429 = vmatprep.subr.mxu0 0.0
      %430 = vmatpush2.msra.mxu0 0.0
      %431 = vmatprep.subr.mxu0 0.0
      %432 = vmatpush2.msra.mxu0 0.0
      %433 = vmatprep.mubr.f32.mxu0 0.0
      %434 = vmatmul.mubr.f32.gmra.mxu0 %v228
      %v435 = vpop.f32.mrf.mxu0
      %v436 = vadd.f32 0.0, %v435
      %v437 = vpop.f32.mrf.mxu0
      %v438 = vadd.f32 0.0, %v437
      %439 = vdwg.mxu0
      %v440 = vadd.f32 %v230, %v365
      %v441 = vadd.f32 %v231, %v367
      %v442 = vadd.f32 %v232, %v436
      %v443 = vadd.f32 %v233, %v438
      %v444 = vtanh.pop %v440
      %v445 = vxor.u32 %v441, 2147483648
      %v446 = vmul.f32 %v445, 1.442695
      %v447 = vpow.pop %v446
      %v448 = vadd.f32 %v447, 1.0
      %v449 = vrcp.pop %v448
      %v450 = vmul.f32 1.0, %v449
      %v451 = vxor.u32 %v442, 2147483648
      %v452 = vmul.f32 %v451, 1.442695
      %v453 = vpow.pop %v452
      %v454 = vadd.f32 %v453, 1.0
      %v455 = vrcp.pop %v454
      %v456 = vmul.f32 1.0, %v455
      %v457 = vxor.u32 %v443, 2147483648
      %v458 = vmul.f32 %v457, 1.442695
      %v459 = vpow.pop %v458
      %v460 = vadd.f32 %v459, 1.0
      %v461 = vrcp.pop %v460
      %v462 = vmul.f32 1.0, %v461
      %v463 = vmul.f32 %v444, %v450
      %v464 = vmul.f32 %v229, %v456
      %v465 = vadd.f32 %v463, %v464
      %v466 = vtanh.pop %v465
      %v467 = vmul.f32 %v466, %v462
      %468 = vst [vmem:[#allocation3] sm:$0xff] %v465
      %469 = vst [vmem:[#allocation2] sm:$0xff] %v467
      %p470 = scmp.eq.s32.totalorder %s20, 7
      // Predicated region
      $region41: #{lstm_forward.1} parent=35 // pred_check
        %p471 = pneg %p470
      $region42: #{lstm_forward.1} parent=35 // pred_check_branch
        %473 = sbr.rel (%p471) target = $region44
      $region43: #{lstm_forward.1} parent=35 // pred_region
        %v474 = vld [vmem:[%s2] sm:$0xff]
        %v475 = vld [vmem:[%s2 + $0x8] sm:$0xff]
        %v476 = vld [vmem:[%s2 + $0x10] sm:$0xff]
        %v477 = vld [vmem:[%s2 + $0x18] sm:$0xff]
        %v478 = vld [vmem:[%s2 + $0x20] sm:$0xff]
        %v479 = vld [vmem:[%s2 + $0x28] sm:$0xff]
        %v480 = vld [vmem:[%s2 + $0x30] sm:$0xff]
        %v481 = vld [vmem:[%s2 + $0x38] sm:$0xff]
        %v482 = vld [vmem:[%s2 + $0x40] sm:$0xff]
        %v483 = vld [vmem:[%s2 + $0x48] sm:$0xff]
        %v484 = vld [vmem:[%s2 + $0x50] sm:$0xff]
        %v485 = vld [vmem:[%s2 + $0x58] sm:$0xff]
        %v486 = vld [vmem:[%s2 + $0x60] sm:$0xff]
        %v487 = vld [vmem:[%s2 + $0x68] sm:$0xff]
        %v488 = vld [vmem:[%s2 + $0x70] sm:$0xff]
        %v489 = vld [vmem:[%s2 + $0x78] sm:$0xff]
        %v490 = vld [vmem:[%s3] sm:$0x1]
        %v492 = vlaneseq
        %v493 = vshrl.u32 %v492, 7
        %v494 = vsub.s32 0, %v493
        %v495 = vrot.slane %v490, %v494
        %497 = vmatprep.subr.mxu0 0.0
        %498 = vmatpush1.msra.mxu0 %v489
        %499 = vmatprep.subr.mxu0 0.0
        %500 = vmatpush1.msra.mxu0 %v488
        %501 = vmatprep.subr.mxu0 0.0
        %502 = vmatpush1.msra.mxu0 %v487
        %503 = vmatprep.subr.mxu0 0.0
        %504 = vmatpush1.msra.mxu0 %v486
        %505 = vmatprep.subr.mxu0 0.0
        %506 = vmatpush1.msra.mxu0 %v485
        %507 = vmatprep.subr.mxu0 0.0
        %508 = vmatpush1.msra.mxu0 %v484
        %509 = vmatprep.subr.mxu0 0.0
        %510 = vmatpush1.msra.mxu0 %v483
        %511 = vmatprep.subr.mxu0 0.0
        %512 = vmatpush1.msra.mxu0 %v482
        %513 = vmatprep.subr.mxu0 0.0
        %514 = vmatpush1.msra.mxu0 %v481
        %515 = vmatprep.subr.mxu0 0.0
        %516 = vmatpush1.msra.mxu0 %v480
        %517 = vmatprep.subr.mxu0 0.0
        %518 = vmatpush1.msra.mxu0 %v479
        %519 = vmatprep.subr.mxu0 0.0
        %520 = vmatpush1.msra.mxu0 %v478
        %521 = vmatprep.subr.mxu0 0.0
        %522 = vmatpush1.msra.mxu0 %v477
        %523 = vmatprep.subr.mxu0 0.0
        %524 = vmatpush1.msra.mxu0 %v476
        %525 = vmatprep.subr.mxu0 0.0
        %526 = vmatpush1.msra.mxu0 %v475
        %527 = vmatprep.subr.mxu0 0.0
        %528 = vmatpush1.msra.mxu0 %v474
        %529 = vmatprep.subr.mxu0 0.0
        %530 = vmatpush2.msra.mxu0 0.0
        %531 = vmatprep.subr.mxu0 0.0
        %532 = vmatpush2.msra.mxu0 0.0
        %533 = vmatprep.subr.mxu0 0.0
        %534 = vmatpush2.msra.mxu0 0.0
        %535 = vmatprep.subr.mxu0 0.0
        %536 = vmatpush2.msra.mxu0 0.0
        %537 = vmatprep.subr.mxu0 0.0
        %538 = vmatpush2.msra.mxu0 0.0
        %539 = vmatprep.subr.mxu0 0.0
        %540 = vmatpush2.msra.mxu0 0.0
        %541 = vmatprep.subr.mxu0 0.0
        %542 = vmatpush2.msra.mxu0 0.0
        %543 = vmatprep.subr.mxu0 0.0
        %544 = vmatpush2.msra.mxu0 0.0
        %545 = vmatprep.subr.mxu0 0.0
        %546 = vmatpush2.msra.mxu0 0.0
        %547 = vmatprep.subr.mxu0 0.0
        %548 = vmatpush2.msra.mxu0 0.0
        %549 = vmatprep.subr.mxu0 0.0
        %550 = vmatpush2.msra.mxu0 0.0
        %551 = vmatprep.subr.mxu0 0.0
        %552 = vmatpush2.msra.mxu0 0.0
        %553 = vmatprep.subr.mxu0 0.0
        %554 = vmatpush2.msra.mxu0 0.0
        %555 = vmatprep.subr.mxu0 0.0
        %556 = vmatpush2.msra.mxu0 0.0
        %557 = vmatprep.subr.mxu0 0.0
        %558 = vmatpush2.msra.mxu0 0.0
        %559 = vmatprep.subr.mxu0 0.0
        %560 = vmatpush2.msra.mxu0 0.0
        %561 = vmatprep.mubr.f32.mxu0 0.0
        %562 = vmatmul.mubr.f32.gmra.mxu0 %v467
        %v563 = vpop.f32.mrf.mxu0
        %v564 = vadd.f32 %v495, %v563
        %v565 = vpop.f32.mrf.mxu0
        %566 = vdwg.mxu0
        %567 = vst [vmem:[%s221] sm:$0xff] %v564
      $region44: #{lstm_forward.1} parent=35 // pred_fallthru
        _
      %p568 = scmp.lt.s32.totalorder %s19, 0
      %s569 = scalar_select %p568, %s19, 0
      %s570 = smul.addr %s569, 8
      %s571 = scalar_lea.vmem %s4, %s570
      // Predicated region
      $region45: #{lstm_forward.1} parent=35 // pred_check
        %p572 = pneg %p136
      $region46: #{lstm_forward.1} parent=35 // pred_check_branch
        %574 = sbr.rel (%p572) target = $region48
      $region47: #{lstm_forward.1} parent=35 // pred_region
        _
      $region48: #{lstm_forward.1} parent=35 // pred_fallthru
        _
      // Predicated region
      $region49: #{lstm_forward.1} parent=35 // pred_check
        %p575 = pneg %p136
      $region50: #{lstm_forward.1} parent=35 // pred_check_branch
        %577 = sbr.rel (%p575) target = $region52
      $region51: #{lstm_forward.1} parent=35 // pred_region
        %p578 = scmp.lt.s32.totalorder %s19, 0
        %s579 = scalar_select %p578, %s19, 0
        %s580 = smul.addr %s579, 8
        %s581 = scalar_lea.vmem %s4, %s580
      $region52: #{lstm_forward.1} parent=35 // pred_fallthru
        _
    $region36: #{lstm_forward.1} parent=5 // pred_fallthru
      _
    %p582 = scmp.le.s32.totalorder 2, %s10
    // Predicated region
    $region53: #{lstm_forward.1} parent=5 // pred_check
      %p583 = pneg %p582
    $region54: #{lstm_forward.1} parent=5 // pred_check_branch
      %585 = sbr.rel (%p583) target = $region56
    $region55: #{lstm_forward.1} parent=5 // pred_region
      %s586 = ssub.s32 %s10, 2
    $region56: #{lstm_forward.1} parent=5 // pred_fallthru
      _
  $region6: #{lstm_forward.1} parent=0 // loop_footer
    %s14 = sadd.s32 1, %s10
  $region7: #{lstm_forward.1} parent=0 // loop_footer_branch
    %9 = sbr.rel target = $region3
  $region8: #{lstm_forward.1} parent=0 // loop_exit
    _

</llo_original>
